<compile_context>
chip_gen: v5e
topology: v5e:2x2
jax: 0.10.0
libtpu: 0.0.40
codegen_flags: <defaults>
</compile_context>

<pallas_src>
import math

import jax
import jax.numpy as jnp
from jax import lax
from jax.experimental import pallas as pl
from jax.experimental.pallas import tpu as pltpu

NEAR = 0.1


# --------------------------------------------------------------------------- #
# Hardware-aware tiling helpers
# --------------------------------------------------------------------------- #
def _device_kind() -> str:
    try:
        return jax.devices()[0].device_kind.lower()
    except Exception:
        return ""


def _default_tile_rows() -> int:
    kind = _device_kind()
    if "v7" in kind:
        # ~18 MiB of double-buffered VMEM per step; inside v7x's 32 MiB scoped
        # default, and big enough to push grid-step overhead below ~10%.
        return 2048
    # v5e (16 MiB scoped default) / v6e: ~9 MiB per step, already >=85% of the
    # HBM roofline.
    return 1024


def _pick_tiling(n_rows: int, tile_rows_target: int, min_tiles: int):
    """Near-balanced tiles with <=8 rows (1024 points) of padding."""
    r8 = max(8, ((n_rows + 7) // 8) * 8)
    target = max(8, ((int(tile_rows_target) + 7) // 8) * 8)
    num_tiles = max(1, (r8 + target - 1) // target)
    # On multi-TensorCore chips make sure there are at least `min_tiles` grid
    # steps so the 'parallel' axis can be sharded across cores.
    num_tiles = max(num_tiles, min(min_tiles, r8 // 8))
    tile_r = ((((r8 + num_tiles - 1) // num_tiles) + 7) // 8) * 8
    r_pad = num_tiles * tile_r
    return tile_r, r_pad, num_tiles


# --------------------------------------------------------------------------- #
# Kernel
# --------------------------------------------------------------------------- #
def _lighting_w_isect_kernel(params_ref, pts_ref, dir_ref, spec_ref):
    # params (SMEM, scalar-prefetched):
    #   [0:3]  light position (x, y, z)
    #   [3:6]  intensity / (4*pi)      (pre-scaled in the wrapper)
    #   [6:9]  occluder sphere center
    #   [9]    occluder radius^2
    #   [10]   far = max distance to the light (global, precomputed)
    lx, ly, lz = params_ref[0], params_ref[1], params_ref[2]
    i4x, i4y, i4z = params_ref[3], params_ref[4], params_ref[5]
    ocx, ocy, ocz = params_ref[6], params_ref[7], params_ref[8]
    r2 = params_ref[9]
    far = params_ref[10]

    px = pts_ref[0]                                     # [tile_r, 128]
    py = pts_ref[1]
    pz = pts_ref[2]

    # ---- lights(pts): point light -> unit dir + inverse-square spectrum ----
    dx = lx - px
    dy = ly - py
    dz = lz - pz
    dist2 = dx * dx + dy * dy + dz * dz
    inv_dist = lax.rsqrt(dist2)                         # EUP, no divide/sqrt
    ux = dx * inv_dist
    uy = dy * inv_dist
    uz = dz * inv_dist
    inv_dist2 = inv_dist * inv_dist                     # 1 / dist^2

    # ---- isect_fn(pts, dir, near=0.1, far): ray/sphere occlusion -----------
    ox = px - ocx
    oy = py - ocy
    oz = pz - ocz
    b = ox * ux + oy * uy + oz * uz
    c = ox * ox + oy * oy + oz * oz - r2
    disc = b * b - c
    sq = jnp.sqrt(jnp.maximum(disc, 0.0))

    # Roots: t0 = -b - sq, t1 = -b + sq.  Folded range tests (no t0/t1 vregs):
    #   t1 in [NEAR, far]  <=>   sq in [b + NEAR, b + far]
    #   t0 in [NEAR, far]  <=>  -sq in [b + NEAR, b + far]
    bn = b + NEAR
    bf = b + far
    nsq = -sq
    hit_t1 = (sq >= bn) & (sq <= bf)
    hit_t0 = (nsq >= bn) & (nsq <= bf)
    visible = jnp.logical_not((disc > 0.0) & (hit_t0 | hit_t1))

    # ---- outputs: dir, where(visible, spectrum, 0) --------------------------
    dir_ref[0] = ux
    dir_ref[1] = uy
    dir_ref[2] = uz
    masked_inv = jnp.where(visible, inv_dist2, 0.0)     # single select/pt
    spec_ref[0] = i4x * masked_inv
    spec_ref[1] = i4y * masked_inv
    spec_ref[2] = i4z * masked_inv


# --------------------------------------------------------------------------- #
# Entry points
# --------------------------------------------------------------------------- #
def lighting_w_isect_planes(pts_planes, light_pos, intensity, occ_center,
                            occ_radius, far, *, tile_r):
    """Fast path: padded lane-dense slab in, padded slabs out (no pad/slice).

    pts_planes: f32[3, R_pad, 128] with R_pad % tile_r == 0.
    Returns (dir f32[3, R_pad, 128], spectrum f32[3, R_pad, 128]).
    Padded lanes produce finite garbage that callers must ignore.
    """
    pts_planes = jnp.asarray(pts_planes, jnp.float32)
    assert pts_planes.ndim == 3 and pts_planes.shape[0] == 3
    assert pts_planes.shape[2] == 128
    r_pad = pts_planes.shape[1]
    assert r_pad % tile_r == 0

    light_pos = jnp.asarray(light_pos, jnp.float32).reshape(3)
    intensity = jnp.asarray(intensity, jnp.float32).reshape(3)
    occ_center = jnp.asarray(occ_center, jnp.float32).reshape(3)
    occ_radius = jnp.asarray(occ_radius, jnp.float32).reshape(())
    far = jnp.asarray(far, jnp.float32).reshape(())

    params = jnp.concatenate([
        light_pos,
        intensity * (1.0 / (4.0 * math.pi)),            # pre-scale: I / (4*pi)
        occ_center,
        jnp.stack([occ_radius * occ_radius, far]),      # r^2, far
    ]).astype(jnp.float32)                              # (11,) -> SMEM prefetch

    n_pad = r_pad * 128
    block = (3, tile_r, 128)
    tile_spec = pl.BlockSpec(block, lambda i, prm: (0, i, 0))

    # 1 input + 2 outputs, each double-buffered.  Keep the scoped limit well
    # under v7x's 64 MiB physical VMEM; v5e/v6e have 128 MiB physical.
    per_buf = 3 * tile_r * 128 * 4
    vmem_limit = int(min(max(6 * per_buf + (4 << 20), 16 << 20), 48 << 20))

    dir_p, spec_p = pl.pallas_call(
        _lighting_w_isect_kernel,
        out_shape=(jax.ShapeDtypeStruct((3, r_pad, 128), jnp.float32),
                   jax.ShapeDtypeStruct((3, r_pad, 128), jnp.float32)),
        grid_spec=pltpu.PrefetchScalarGridSpec(
            num_scalar_prefetch=1,
            grid=(r_pad // tile_r,),
            in_specs=[tile_spec],
            out_specs=(tile_spec, tile_spec)),
        compiler_params=pltpu.CompilerParams(
            dimension_semantics=("parallel",),           # v7x: shard over 2 TCs
            vmem_limit_bytes=vmem_limit),
        cost_estimate=pl.CostEstimate(
            flops=42 * n_pad,
            transcendentals=2 * n_pad,
            bytes_accessed=36 * n_pad + 44),
    )(params, pts_planes)
    return dir_p, spec_p


def lighting_w_isect_soa(pts_soa, light_pos, intensity, occ_center, occ_radius,
                         *, far=None, tile_rows=None):
    """Coordinate-planar (SoA) entry point.

    pts_soa: f32[3, N].  Returns (dir f32[3, N], spectrum f32[3, N]).
    `far` (max light distance) may be supplied by the caller so the global
    reduction fuses with an existing read of the points.
    """
    pts_soa = jnp.asarray(pts_soa, jnp.float32)
    assert pts_soa.ndim == 2 and pts_soa.shape[0] == 3
    n = pts_soa.shape[1]
    light_pos = jnp.asarray(light_pos, jnp.float32).reshape(3)

    if far is None:
        # far = dist.max(): global reduction over the UNPADDED points.
        d = light_pos[:, None] - pts_soa
        far = jnp.sqrt(jnp.max(jnp.sum(d * d, axis=0)))

    if tile_rows is None:
        tile_rows = _default_tile_rows()
    n_rows = pl.cdiv(n, 128)
    min_tiles = 2 if "v7" in _device_kind() else 1
    tile_r, r_pad, _ = _pick_tiling(n_rows, tile_rows, min_tiles)

    n_pad = r_pad * 128
    if n_pad != n:
        # <=8 rows of padding per tile -> <1% extra traffic for any N.
        pts_soa = jnp.pad(pts_soa, ((0, 0), (0, n_pad - n)))
    pts_planes = pts_soa.reshape(3, r_pad, 128)

    dir_p, spec_p = lighting_w_isect_planes(
        pts_planes, light_pos, intensity, occ_center, occ_radius, far,
        tile_r=tile_r)

    dirs = dir_p.reshape(3, n_pad)[:, :n]
    spectrum = spec_p.reshape(3, n_pad)[:, :n]
    return dirs, spectrum


def lighting_w_isect(pts, light_pos, intensity, occ_center, occ_radius,
                     *, tile_rows=None):
    """[N, 3] convenience interface matching the PyTorch module layout."""
    # TODO(synk): boolean-mask compaction `pts[mask]` (dynamic output shape) is
    # not expressible in Pallas; only the mask=None path is implemented.
    pts = jnp.asarray(pts, jnp.float32)
    light_pos = jnp.asarray(light_pos, jnp.float32).reshape(3)
    # far is computed from the AoS array so the reduction fuses with the read
    # the transpose below already performs (no dedicated HBM pass).
    d = light_pos[None, :] - pts
    far = jnp.sqrt(jnp.max(jnp.sum(d * d, axis=-1)))
    dirs, spectrum = lighting_w_isect_soa(
        pts.T, light_pos, intensity, occ_center, occ_radius,
        far=far, tile_rows=tile_rows)
    return dirs.T, spectrum.T


# --------------------------------------------------------------------------- #
# Reference + test
# --------------------------------------------------------------------------- #
def lighting_w_isect_ref(pts, light_pos, intensity, occ_center, occ_radius):
    """Plain-JAX reference mirroring the PyTorch semantics (mask=None)."""
    d = light_pos[None, :] - pts
    dist = jnp.sqrt(jnp.sum(d * d, axis=-1, keepdims=True))
    dirs = d / dist
    spectrum = intensity[None, :] / (4.0 * math.pi * dist ** 2)
    far = jnp.max(dist)
    oc = pts - occ_center[None, :]
    b = jnp.sum(oc * dirs, axis=-1, keepdims=True)
    c = jnp.sum(oc * oc, axis=-1, keepdims=True) - occ_radius ** 2
    disc = b * b - c
    sq = jnp.sqrt(jnp.maximum(disc, 0.0))
    t0 = -b - sq
    t1 = -b + sq
    hit = (disc > 0.0) & (((t0 >= NEAR) & (t0 <= far)) |
                          ((t1 >= NEAR) & (t1 <= far)))
    visible = jnp.logical_not(hit)
    return dirs, jnp.where(visible, spectrum, 0.0)


if __name__ == "__main__":
    key = jax.random.PRNGKey(0)
    k1, k2 = jax.random.split(key)

    # Deterministic "parameters" (the original module has none; lights/isect_fn
    # are injected callables — their parameters are fixed here in-script).
    light_pos = jnp.array([2.0, 3.0, 1.5], jnp.float32)     # point light position
    intensity = jnp.array([30.0, 25.0, 20.0], jnp.float32)  # RGB intensity
    occ_center = jnp.array([0.5, 0.5, 0.25], jnp.float32)   # occluder sphere
    occ_radius = jnp.float32(0.4)

    # Case 1: multi-tile grid (small tile forces 4 grid steps of 8x128 points).
    N = 4096
    pts = jax.random.uniform(k1, (N, 3), jnp.float32, minval=-1.0, maxval=1.0)
    dirs, spec = lighting_w_isect(pts, light_pos, intensity, occ_center,
                                  occ_radius, tile_rows=8)
    jax.block_until_ready((dirs, spec))
    dirs_ref, spec_ref = lighting_w_isect_ref(pts, light_pos, intensity,
                                              occ_center, occ_radius)
    assert dirs.shape == (N, 3) and spec.shape == (N, 3)
    assert jnp.allclose(dirs, dirs_ref, rtol=1e-4, atol=1e-4)
    assert jnp.allclose(spec, spec_ref, rtol=1e-4, atol=1e-4)

    # Case 2: ragged N (not a multiple of 128), default hardware-sized tile,
    # exercising the minimal-pad/slice path.
    N2 = 1000
    pts2 = jax.random.uniform(k2, (N2, 3), jnp.float32, minval=-1.0, maxval=1.0)
    dirs2, spec2 = lighting_w_isect(pts2, light_pos, intensity, occ_center,
                                    occ_radius)
    jax.block_until_ready((dirs2, spec2))
    dirs2_ref, spec2_ref = lighting_w_isect_ref(pts2, light_pos, intensity,
                                                occ_center, occ_radius)
    assert dirs2.shape == (N2, 3) and spec2.shape == (N2, 3)
    assert jnp.allclose(dirs2, dirs2_ref, rtol=1e-4, atol=1e-4)
    assert jnp.allclose(spec2, spec2_ref, rtol=1e-4, atol=1e-4)

    print("KERNEL_OK")
</pallas_src>

<mosaic_0001>
module attributes {stable_mosaic.version = 11 : i64} {
  func.func @_lighting_w_isect_kernel(%arg0: i32, %arg1: memref<11xf32, #tpu.memory_space<smem>>, %arg2: memref<3x8x128xf32, #tpu.memory_space<vmem>>, %arg3: memref<3x8x128xf32, #tpu.memory_space<vmem>>, %arg4: memref<3x8x128xf32, #tpu.memory_space<vmem>>) attributes {dimension_semantics = [#tpu.dimension_semantics<parallel>], iteration_bounds = array<i64: 4>, scalar_prefetch = 1 : i64, scratch_operands = 0 : i64, tpu.core_type = #tpu.core_type<tc>, window_params = [{transform_indices = @transform_0, window_bounds = array<i64: 3, 8, 128>}, {transform_indices = @transform_1, window_bounds = array<i64: 3, 8, 128>}, {transform_indices = @transform_2, window_bounds = array<i64: 3, 8, 128>}]} {
    %c0 = arith.constant 0 : index
    %0 = memref.load %arg1[%c0] : memref<11xf32, #tpu.memory_space<smem>>
    %c1 = arith.constant 1 : index
    %1 = memref.load %arg1[%c1] : memref<11xf32, #tpu.memory_space<smem>>
    %c2 = arith.constant 2 : index
    %2 = memref.load %arg1[%c2] : memref<11xf32, #tpu.memory_space<smem>>
    %c3 = arith.constant 3 : index
    %3 = memref.load %arg1[%c3] : memref<11xf32, #tpu.memory_space<smem>>
    %c4 = arith.constant 4 : index
    %4 = memref.load %arg1[%c4] : memref<11xf32, #tpu.memory_space<smem>>
    %c5 = arith.constant 5 : index
    %5 = memref.load %arg1[%c5] : memref<11xf32, #tpu.memory_space<smem>>
    %c6 = arith.constant 6 : index
    %6 = memref.load %arg1[%c6] : memref<11xf32, #tpu.memory_space<smem>>
    %c7 = arith.constant 7 : index
    %7 = memref.load %arg1[%c7] : memref<11xf32, #tpu.memory_space<smem>>
    %c8 = arith.constant 8 : index
    %8 = memref.load %arg1[%c8] : memref<11xf32, #tpu.memory_space<smem>>
    %c9 = arith.constant 9 : index
    %9 = memref.load %arg1[%c9] : memref<11xf32, #tpu.memory_space<smem>>
    %c10 = arith.constant 10 : index
    %10 = memref.load %arg1[%c10] : memref<11xf32, #tpu.memory_space<smem>>
    %c0_0 = arith.constant 0 : index
    %c0_1 = arith.constant 0 : index
    %c0_2 = arith.constant 0 : index
    %11 = vector.load %arg2[%c0_0, %c0_1, %c0_2] : memref<3x8x128xf32, #tpu.memory_space<vmem>>, vector<1x8x128xf32>
    %12 = vector.shape_cast %11 : vector<1x8x128xf32> to vector<8x128xf32>
    %c1_3 = arith.constant 1 : index
    %c0_4 = arith.constant 0 : index
    %c0_5 = arith.constant 0 : index
    %13 = vector.load %arg2[%c1_3, %c0_4, %c0_5] : memref<3x8x128xf32, #tpu.memory_space<vmem>>, vector<1x8x128xf32>
    %14 = vector.shape_cast %13 : vector<1x8x128xf32> to vector<8x128xf32>
    %c2_6 = arith.constant 2 : index
    %c0_7 = arith.constant 0 : index
    %c0_8 = arith.constant 0 : index
    %15 = vector.load %arg2[%c2_6, %c0_7, %c0_8] : memref<3x8x128xf32, #tpu.memory_space<vmem>>, vector<1x8x128xf32>
    %16 = vector.shape_cast %15 : vector<1x8x128xf32> to vector<8x128xf32>
    %17 = vector.broadcast %0 : f32 to vector<8x128xf32>
    %18 = arith.subf %17, %12 : vector<8x128xf32>
    %19 = vector.broadcast %1 : f32 to vector<8x128xf32>
    %20 = arith.subf %19, %14 : vector<8x128xf32>
    %21 = vector.broadcast %2 : f32 to vector<8x128xf32>
    %22 = arith.subf %21, %16 : vector<8x128xf32>
    %23 = arith.mulf %18, %18 : vector<8x128xf32>
    %24 = arith.mulf %20, %20 : vector<8x128xf32>
    %25 = arith.addf %23, %24 : vector<8x128xf32>
    %26 = arith.mulf %22, %22 : vector<8x128xf32>
    %27 = arith.addf %25, %26 : vector<8x128xf32>
    %28 = math.rsqrt %27 : vector<8x128xf32>
    %29 = arith.mulf %18, %28 : vector<8x128xf32>
    %30 = arith.mulf %20, %28 : vector<8x128xf32>
    %31 = arith.mulf %22, %28 : vector<8x128xf32>
    %32 = arith.mulf %28, %28 : vector<8x128xf32>
    %33 = vector.broadcast %6 : f32 to vector<8x128xf32>
    %34 = arith.subf %12, %33 : vector<8x128xf32>
    %35 = vector.broadcast %7 : f32 to vector<8x128xf32>
    %36 = arith.subf %14, %35 : vector<8x128xf32>
    %37 = vector.broadcast %8 : f32 to vector<8x128xf32>
    %38 = arith.subf %16, %37 : vector<8x128xf32>
    %39 = arith.mulf %34, %29 : vector<8x128xf32>
    %40 = arith.mulf %36, %30 : vector<8x128xf32>
    %41 = arith.addf %39, %40 : vector<8x128xf32>
    %42 = arith.mulf %38, %31 : vector<8x128xf32>
    %43 = arith.addf %41, %42 : vector<8x128xf32>
    %44 = arith.mulf %34, %34 : vector<8x128xf32>
    %45 = arith.mulf %36, %36 : vector<8x128xf32>
    %46 = arith.addf %44, %45 : vector<8x128xf32>
    %47 = arith.mulf %38, %38 : vector<8x128xf32>
    %48 = arith.addf %46, %47 : vector<8x128xf32>
    %49 = vector.broadcast %9 : f32 to vector<8x128xf32>
    %50 = arith.subf %48, %49 : vector<8x128xf32>
    %51 = arith.mulf %43, %43 : vector<8x128xf32>
    %52 = arith.subf %51, %50 : vector<8x128xf32>
    %cst = arith.constant 0.000000e+00 : f32
    %53 = vector.broadcast %cst : f32 to vector<8x128xf32>
    %54 = arith.maximumf %52, %53 : vector<8x128xf32>
    %55 = math.sqrt %54 : vector<8x128xf32>
    %cst_9 = arith.constant 1.000000e-01 : f32
    %56 = vector.broadcast %cst_9 : f32 to vector<8x128xf32>
    %57 = arith.addf %43, %56 : vector<8x128xf32>
    %58 = vector.broadcast %10 : f32 to vector<8x128xf32>
    %59 = arith.addf %43, %58 : vector<8x128xf32>
    %cst_10 = arith.constant 0.000000e+00 : f32
    %60 = vector.broadcast %cst_10 : f32 to vector<8x128xf32>
    %61 = arith.subf %60, %55 : vector<8x128xf32>
    %62 = arith.cmpf oge, %55, %57 : vector<8x128xf32>
    %63 = arith.cmpf ole, %55, %59 : vector<8x128xf32>
    %64 = arith.andi %62, %63 : vector<8x128xi1>
    %65 = arith.cmpf oge, %61, %57 : vector<8x128xf32>
    %66 = arith.cmpf ole, %61, %59 : vector<8x128xf32>
    %67 = arith.andi %65, %66 : vector<8x128xi1>
    %cst_11 = arith.constant 0.000000e+00 : f32
    %68 = vector.broadcast %cst_11 : f32 to vector<8x128xf32>
    %69 = arith.cmpf ogt, %52, %68 : vector<8x128xf32>
    %70 = arith.ori %67, %64 : vector<8x128xi1>
    %71 = arith.andi %69, %70 : vector<8x128xi1>
    %cst_12 = arith.constant dense<true> : vector<8x128xi1>
    %72 = arith.xori %71, %cst_12 : vector<8x128xi1>
    %c0_13 = arith.constant 0 : index
    %c0_14 = arith.constant 0 : index
    %c0_15 = arith.constant 0 : index
    %73 = vector.load %arg3[%c0_13, %c0_14, %c0_15] : memref<3x8x128xf32, #tpu.memory_space<vmem>>, vector<1x8x128xf32>
    %74 = vector.shape_cast %73 : vector<1x8x128xf32> to vector<8x128xf32>
    %75 = vector.shape_cast %29 : vector<8x128xf32> to vector<1x8x128xf32>
    tpu.vector_store %arg3[%c0_13, %c0_14, %c0_15], %75 {strides = array<i32>} : memref<3x8x128xf32, #tpu.memory_space<vmem>>, vector<1x8x128xf32>,
    %c1_16 = arith.constant 1 : index
    %c0_17 = arith.constant 0 : index
    %c0_18 = arith.constant 0 : index
    %76 = vector.load %arg3[%c1_16, %c0_17, %c0_18] : memref<3x8x128xf32, #tpu.memory_space<vmem>>, vector<1x8x128xf32>
    %77 = vector.shape_cast %76 : vector<1x8x128xf32> to vector<8x128xf32>
    %78 = vector.shape_cast %30 : vector<8x128xf32> to vector<1x8x128xf32>
    tpu.vector_store %arg3[%c1_16, %c0_17, %c0_18], %78 {strides = array<i32>} : memref<3x8x128xf32, #tpu.memory_space<vmem>>, vector<1x8x128xf32>,
    %c2_19 = arith.constant 2 : index
    %c0_20 = arith.constant 0 : index
    %c0_21 = arith.constant 0 : index
    %79 = vector.load %arg3[%c2_19, %c0_20, %c0_21] : memref<3x8x128xf32, #tpu.memory_space<vmem>>, vector<1x8x128xf32>
    %80 = vector.shape_cast %79 : vector<1x8x128xf32> to vector<8x128xf32>
    %81 = vector.shape_cast %31 : vector<8x128xf32> to vector<1x8x128xf32>
    tpu.vector_store %arg3[%c2_19, %c0_20, %c0_21], %81 {strides = array<i32>} : memref<3x8x128xf32, #tpu.memory_space<vmem>>, vector<1x8x128xf32>,
    %cst_22 = arith.constant 0.000000e+00 : f32
    %82 = vector.broadcast %cst_22 : f32 to vector<8x128xf32>
    %83 = arith.select %72, %32, %82 : vector<8x128xi1>, vector<8x128xf32>
    %84 = vector.broadcast %3 : f32 to vector<8x128xf32>
    %85 = arith.mulf %84, %83 : vector<8x128xf32>
    %c0_23 = arith.constant 0 : index
    %c0_24 = arith.constant 0 : index
    %c0_25 = arith.constant 0 : index
    %86 = vector.load %arg4[%c0_23, %c0_24, %c0_25] : memref<3x8x128xf32, #tpu.memory_space<vmem>>, vector<1x8x128xf32>
    %87 = vector.shape_cast %86 : vector<1x8x128xf32> to vector<8x128xf32>
    %88 = vector.shape_cast %85 : vector<8x128xf32> to vector<1x8x128xf32>
    tpu.vector_store %arg4[%c0_23, %c0_24, %c0_25], %88 {strides = array<i32>} : memref<3x8x128xf32, #tpu.memory_space<vmem>>, vector<1x8x128xf32>,
    %89 = vector.broadcast %4 : f32 to vector<8x128xf32>
    %90 = arith.mulf %89, %83 : vector<8x128xf32>
    %c1_26 = arith.constant 1 : index
    %c0_27 = arith.constant 0 : index
    %c0_28 = arith.constant 0 : index
    %91 = vector.load %arg4[%c1_26, %c0_27, %c0_28] : memref<3x8x128xf32, #tpu.memory_space<vmem>>, vector<1x8x128xf32>
    %92 = vector.shape_cast %91 : vector<1x8x128xf32> to vector<8x128xf32>
    %93 = vector.shape_cast %90 : vector<8x128xf32> to vector<1x8x128xf32>
    tpu.vector_store %arg4[%c1_26, %c0_27, %c0_28], %93 {strides = array<i32>} : memref<3x8x128xf32, #tpu.memory_space<vmem>>, vector<1x8x128xf32>,
    %94 = vector.broadcast %5 : f32 to vector<8x128xf32>
    %95 = arith.mulf %94, %83 : vector<8x128xf32>
    %c2_29 = arith.constant 2 : index
    %c0_30 = arith.constant 0 : index
    %c0_31 = arith.constant 0 : index
    %96 = vector.load %arg4[%c2_29, %c0_30, %c0_31] : memref<3x8x128xf32, #tpu.memory_space<vmem>>, vector<1x8x128xf32>
    %97 = vector.shape_cast %96 : vector<1x8x128xf32> to vector<8x128xf32>
    %98 = vector.shape_cast %95 : vector<8x128xf32> to vector<1x8x128xf32>
    tpu.vector_store %arg4[%c2_29, %c0_30, %c0_31], %98 {strides = array<i32>} : memref<3x8x128xf32, #tpu.memory_space<vmem>>, vector<1x8x128xf32>,
    return
  }
  func.func @transform_0(%arg0: i32, %arg1: memref<11xf32, #tpu.memory_space<smem>>) -> (i32, i32, i32) {
    %c0_i32 = arith.constant 0 : i32
    %c0_i32_0 = arith.constant 0 : i32
    %c0_i32_1 = arith.constant 0 : i32
    return %c0_i32, %arg0, %c0_i32_0 : i32, i32, i32
  }
  func.func @transform_1(%arg0: i32, %arg1: memref<11xf32, #tpu.memory_space<smem>>) -> (i32, i32, i32) {
    %c0_i32 = arith.constant 0 : i32
    %c0_i32_0 = arith.constant 0 : i32
    %c0_i32_1 = arith.constant 0 : i32
    return %c0_i32, %arg0, %c0_i32_0 : i32, i32, i32
  }
  func.func @transform_2(%arg0: i32, %arg1: memref<11xf32, #tpu.memory_space<smem>>) -> (i32, i32, i32) {
    %c0_i32 = arith.constant 0 : i32
    %c0_i32_0 = arith.constant 0 : i32
    %c0_i32_1 = arith.constant 0 : i32
    return %c0_i32, %arg0, %c0_i32_0 : i32, i32, i32
  }
}

</mosaic_0001>

<llo_original>
// kernel: tpu_custom_call.1
$region0: #{tpu_custom_call.1}
  #allocation0 [shape = 'u32[]', space=smem, size = 0x4, offset = 0x4, fixed_abs, tag = 'smem constant byte address 0x4 - core index']
  #allocation1 [shape = 'u32[72,128]{1,0:T(1,128)}', space=vmem, size = 0x9000, scoped, tag = 'internal scratch']
  #allocation2 [shape = 's32[1]{0}', space=sflag, size = 0x4, scoped, tag = 'scoped memory for tpu_custom_call.1']
  #allocation3 [shape = 'u8[512]{0}', space=smem, size = 0x200, scoped, tag = 'prefetched SMEM operand 0']
  %s0 = inlined_call_operand.hbm [shape: f32[11], index: 0, kind: input, shape index: {}]
  %s1 = inlined_call_operand.hbm [shape: f32[3,32,128], index: 1, kind: input, shape index: {}]
  %s2 = inlined_call_operand.hbm [shape: f32[3,32,128], index: 2, kind: output, shape index: {0}]
  %s3 = inlined_call_operand.hbm [shape: f32[3,32,128], index: 3, kind: output, shape index: {1}]
  %4 = xla_tuple %s2, %s3
  %s5 = sld [smem:[#allocation0]]
  $region49: #{tpu_custom_call.1} parent=0
    _
  %s7 = ssub.s32 1, %s5
  %s8 = scalar_select 0, %s7, %s5
  %s10 = sshll.u32 %s0, 4
  %s11 = int_to_ptr.hbm [resolvable:$true] %s10
  %13 = dma.hbm_to_smem %s11, 16, [#allocation3], [#allocation2]
  %15 = dma.done [#allocation2], 16
  %16 = sfence
  $region1: #{tpu_custom_call.1} parent=0
    #allocation4 [shape = 'u8[24576]{0}', space=vmem, size = 0x6000, scoped, tag = 'input window, operand 1']
    #allocation5 [shape = 's32[2]{0}', space=sflag, size = 0x8, scoped, tag = 'scoped memory for tpu_custom_call.1']
    #allocation6 [shape = 's32[2]{0}', space=sflag, size = 0x8, scoped, tag = 'scoped memory for tpu_custom_call.1']
    #allocation7 [shape = 'u8[24576]{0}', space=vmem, size = 0x6000, scoped, tag = 'output window, operand 0']
    #allocation8 [shape = 'u8[24576]{0}', space=vmem, size = 0x6000, scoped, tag = 'output window, operand 1']
    #allocation9 [shape = 's32[2]{0}', space=sflag, size = 0x8, scoped, tag = 'scoped memory for tpu_custom_call.1']
    %17 = vsyncpa [#allocation5], 0
    %s18 = scalar_lea.sflag [#allocation5], 1
    %19 = vsyncpa %s18, 0
    %20 = vsyncpa [#allocation6], 0
    %s21 = scalar_lea.sflag [#allocation6], 1
    %22 = vsyncpa %s21, 0
    %23 = vsyncpa [#allocation9], 0
    %s24 = scalar_lea.sflag [#allocation9], 1
    %25 = vsyncpa %s24, 0
    loop: start=0, step=1, limit=6
    $region2: #{tpu_custom_call.1} parent=1 // loop_pre_header
      _
    $region3: #{tpu_custom_call.1} parent=1 // loop_header
      %s27 = sphi 0, %s31
      %p28 = scmp.ge.s32.totalorder %s27, 6
      %s37 = sphi 0, %s39
      %s40 = sphi 0, %s37
      %s41 = sphi 0, %s40
      %s57 = sphi 0, %s41
      %s63 = sphi 0, %s65
      %s66 = sphi 0, %s63
      %s67 = sphi 0, %s66
      %s83 = sphi 0, %s67
      %s89 = sphi 0, %s91
      %s92 = sphi 0, %s89
      %s93 = sphi 0, %s92
      %s109 = sphi 0, %s93
    $region4: #{tpu_custom_call.1} parent=1 // loop_header_branch
      %30 = sbr.rel (%p28) target = $region8
    $region5: #{tpu_custom_call.1} parent=1 // loop_body
      %s32 = ssub.s32 %s27, 1
      %s33 = ssub.s32 %s27, 2
      %s34 = sadd.s32 %s27, 1
      %s35 = ssub.s32 %s27, %s34
      %p36 = scmp.eq.s32.totalorder %s35, 0
      %s38 = sadd.s32 %s37, 1
      %s39 = scalar_select %p36, %s37, %s38
      %p42 = pneg %p36
      %p43 = scmp.eq.s32.totalorder %s27, 3
      %p44 = por %p42, %p43
      %p45 = scmp.ne.s32.totalorder %s37, %s40
      %p46 = scmp.eq.s32.totalorder %s27, 0
      %p47 = por %p45, %p46
      %p48 = scmp.ne.s32.totalorder %s37, %s40
      %p49 = scmp.eq.s32.totalorder %s32, 3
      %p50 = por %p48, %p49
      %p51 = scmp.ne.s32.totalorder %s40, %s41
      %p52 = scmp.eq.s32.totalorder %s32, 0
      %p53 = por %p51, %p52
      %p54 = scmp.ne.s32.totalorder %s40, %s41
      %p55 = scmp.eq.s32.totalorder %s33, 3
      %p56 = por %p54, %p55
      %p58 = scmp.ne.s32.totalorder %s41, %s57
      %p59 = scmp.eq.s32.totalorder %s33, 0
      %p60 = por %p58, %p59
      %s61 = ssub.s32 %s27, %s34
      %p62 = scmp.eq.s32.totalorder %s61, 0
      %s64 = sadd.s32 %s63, 1
      %s65 = scalar_select %p62, %s63, %s64
      %p68 = pneg %p62
      %p69 = scmp.eq.s32.totalorder %s27, 3
      %p70 = por %p68, %p69
      %p71 = scmp.ne.s32.totalorder %s63, %s66
      %p72 = scmp.eq.s32.totalorder %s27, 0
      %p73 = por %p71, %p72
      %p74 = scmp.ne.s32.totalorder %s63, %s66
      %p75 = scmp.eq.s32.totalorder %s32, 3
      %p76 = por %p74, %p75
      %p77 = scmp.ne.s32.totalorder %s66, %s67
      %p78 = scmp.eq.s32.totalorder %s32, 0
      %p79 = por %p77, %p78
      %p80 = scmp.ne.s32.totalorder %s66, %s67
      %p81 = scmp.eq.s32.totalorder %s33, 3
      %p82 = por %p80, %p81
      %p84 = scmp.ne.s32.totalorder %s67, %s83
      %p85 = scmp.eq.s32.totalorder %s33, 0
      %p86 = por %p84, %p85
      %s87 = ssub.s32 %s27, %s34
      %p88 = scmp.eq.s32.totalorder %s87, 0
      %s90 = sadd.s32 %s89, 1
      %s91 = scalar_select %p88, %s89, %s90
      %p94 = pneg %p88
      %p95 = scmp.eq.s32.totalorder %s27, 3
      %p96 = por %p94, %p95
      %p97 = scmp.ne.s32.totalorder %s89, %s92
      %p98 = scmp.eq.s32.totalorder %s27, 0
      %p99 = por %p97, %p98
      %p100 = scmp.ne.s32.totalorder %s89, %s92
      %p101 = scmp.eq.s32.totalorder %s32, 3
      %p102 = por %p100, %p101
      %p103 = scmp.ne.s32.totalorder %s92, %s93
      %p104 = scmp.eq.s32.totalorder %s32, 0
      %p105 = por %p103, %p104
      %p106 = scmp.ne.s32.totalorder %s92, %s93
      %p107 = scmp.eq.s32.totalorder %s33, 3
      %p108 = por %p106, %p107
      %p110 = scmp.ne.s32.totalorder %s93, %s109
      %p111 = scmp.eq.s32.totalorder %s33, 0
      %p112 = por %p110, %p111
      %p113 = scmp.le.s32.totalorder 1, %s27
      %p114 = scmp.lt.s32.totalorder %s27, 5
      %p115 = pnand %p113, %p114
      %p116 = pneg %p115
      // Predicated region
      $region9: #{tpu_custom_call.1} parent=5 // pred_check
        _
      $region10: #{tpu_custom_call.1} parent=5 // pred_check_branch
        %118 = sbr.rel (%p115) target = $region12
      $region11: #{tpu_custom_call.1} parent=5 // pred_region
        %s119 = ssub.s32 %s27, 1
      $region12: #{tpu_custom_call.1} parent=5 // pred_fallthru
        _
      %p120 = scmp.lt.s32.totalorder %s27, 4
      // Predicated region
      $region13: #{tpu_custom_call.1} parent=5 // pred_check
        %p121 = pneg %p120
      $region14: #{tpu_custom_call.1} parent=5 // pred_check_branch
        %123 = sbr.rel (%p121) target = $region16
      $region15: #{tpu_custom_call.1} parent=5 // pred_region
        // Predicated region
        $region17: #{tpu_custom_call.1} parent=15 // pred_check
          %p124 = pneg %p47
        $region18: #{tpu_custom_call.1} parent=15 // pred_check_branch
          %126 = sbr.rel (%p124) target = $region20
        $region19: #{tpu_custom_call.1} parent=15 // pred_region
          %s127 = sand.u32 %s37, 1
          %s128 = scalar_lea.sflag [#allocation5], %s127
          %s129 = sand.u32 %s37, 1
          %s130 = smul.addr %s129, 24
          %s131 = scalar_lea.vmem [#allocation4], %s130
          %133 = vsyncadd %s128, 0
          %s134 = smul.addr %s27, 8
          %s135 = scalar_lea.hbm %s1, %s134
          %s136 = sshll.u32 %s135, 4
          %s137 = int_to_ptr.hbm [resolvable:$true] %s136
          %s138 = sshll.u32 %s131, 4
          %s139 = int_to_ptr.vmem [resolvable:$true] %s138
          %144 = dma.hbm_to_vmem [thread:$0]  %s137, 384, %s139, %s128, 512, 128, 8
        $region20: #{tpu_custom_call.1} parent=15 // pred_fallthru
          _
      $region16: #{tpu_custom_call.1} parent=5 // pred_fallthru
        _
      %p145 = scmp.le.s32.totalorder 1, %s27
      %p146 = scmp.lt.s32.totalorder %s27, 5
      %p147 = pnand %p145, %p146
      %p148 = pneg %p147
      // Predicated region
      $region21: #{tpu_custom_call.1} parent=5 // pred_check
        _
      $region22: #{tpu_custom_call.1} parent=5 // pred_check_branch
        %150 = sbr.rel (%p147) target = $region24
      $region23: #{tpu_custom_call.1} parent=5 // pred_region
        %s151 = ssub.s32 %s27, 1
        %s152 = sand.u32 %s40, 1
        %s153 = scalar_lea.sflag [#allocation5], %s152
        %s154 = sand.u32 %s40, 1
        %s155 = smul.addr %s154, 24
        %s156 = scalar_lea.vmem [#allocation4], %s155
        // Predicated region
        $region25: #{tpu_custom_call.1} parent=23 // pred_check
          %p157 = pneg %p53
        $region26: #{tpu_custom_call.1} parent=23 // pred_check_branch
          %159 = sbr.rel (%p157) target = $region28
        $region27: #{tpu_custom_call.1} parent=23 // pred_region
          %161 = dma.done %s153, 384
        $region28: #{tpu_custom_call.1} parent=23 // pred_fallthru
          _
        %s162 = sand.u32 %s40, 1
        %s163 = scalar_lea.sflag [#allocation5], %s162
        %s164 = sand.u32 %s40, 1
        %s165 = smul.addr %s164, 24
        %s166 = scalar_lea.vmem [#allocation4], %s165
        %p167 = pneg %p53
        %p168 = pneg %p50
        %p169 = pneg %p79
        %p170 = pneg %p76
        %s171 = sand.u32 %s66, 1
        %s172 = scalar_lea.sflag [#allocation6], %s171
        %s173 = sand.u32 %s66, 1
        %s174 = smul.addr %s173, 24
        %s175 = scalar_lea.vmem [#allocation7], %s174
        %p176 = pneg %p105
        %p177 = pneg %p102
        %s178 = sand.u32 %s92, 1
        %s179 = scalar_lea.sflag [#allocation9], %s178
        %s180 = sand.u32 %s92, 1
        %s181 = smul.addr %s180, 24
        %s182 = scalar_lea.vmem [#allocation8], %s181
        %s183 = sld [smem:[#allocation3]]
        %s184 = sld [smem:[#allocation3 + $0x1]]
        %s185 = sld [smem:[#allocation3 + $0x2]]
        %s186 = sld [smem:[#allocation3 + $0x3]]
        %s187 = sld [smem:[#allocation3 + $0x4]]
        %s188 = sld [smem:[#allocation3 + $0x5]]
        %s189 = sld [smem:[#allocation3 + $0x6]]
        %s190 = sld [smem:[#allocation3 + $0x7]]
        %s191 = sld [smem:[#allocation3 + $0x8]]
        %s192 = sld [smem:[#allocation3 + $0x9]]
        %s193 = sld [smem:[#allocation3 + $0xa]]
        %v194 = vld [vmem:[%s156] sm:$0xff]
        %s195 = scalar_lea.vmem %s156, 8 [#allocation4]
        %v196 = vld [vmem:[%s195] sm:$0xff]
        %s197 = scalar_lea.vmem %s156, 16 [#allocation4]
        %v198 = vld [vmem:[%s197] sm:$0xff]
        %v199 = vstv %s183
        %v200 = vsub.f32 %v199, %v194
        %v201 = vstv %s184
        %v202 = vsub.f32 %v201, %v196
        %v203 = vstv %s185
        %v204 = vsub.f32 %v203, %v198
        %v205 = vmul.f32 %v200, %v200
        %v206 = vmul.f32 %v202, %v202
        %v207 = vadd.f32 %v205, %v206
        %v208 = vmul.f32 %v204, %v204
        %v209 = vadd.f32 %v207, %v208
        %v210 = vrsqrt.pop %v209
        %v211 = vmul.f32 %v210, %v209
        %v212 = vmul.f32 %v211, %v210
        %v213 = vmul.f32 0.5, %v212
        %v214 = vsub.f32 1.5, %v213
        %v215 = vmul.f32 %v210, %v214
        %vm216 = vweird.f32 %v209
        %vm217 = vweird.f32 %v210
        %vm218 = vmor %vm216, %vm217
        %v219 = vsel %vm218, %v210, %v215
        %v220 = vmul.f32 %v200, %v219
        %v221 = vmul.f32 %v202, %v219
        %v222 = vmul.f32 %v204, %v219
        %v223 = vmul.f32 %v219, %v219
        %v224 = vstv %s189
        %v225 = vsub.f32 %v194, %v224
        %v226 = vstv %s190
        %v227 = vsub.f32 %v196, %v226
        %v228 = vstv %s191
        %v229 = vsub.f32 %v198, %v228
        %v230 = vmul.f32 %v225, %v220
        %v231 = vmul.f32 %v227, %v221
        %v232 = vadd.f32 %v230, %v231
        %v233 = vmul.f32 %v229, %v222
        %v234 = vadd.f32 %v232, %v233
        %v235 = vmul.f32 %v225, %v225
        %v236 = vmul.f32 %v227, %v227
        %v237 = vadd.f32 %v235, %v236
        %v238 = vmul.f32 %v229, %v229
        %v239 = vadd.f32 %v237, %v238
        %v240 = vstv %s192
        %v241 = vsub.f32 %v239, %v240
        %v242 = vmul.f32 %v234, %v234
        %v243 = vsub.f32 %v242, %v241
        %v244 = vmax.f32 %v243, 0.0
        %v245 = vrsqrt.pop %v244
        %v246 = vmul.f32 %v245, %v244
        %v247 = vmul.f32 %v246, %v245
        %v248 = vmul.f32 0.5, %v247
        %v249 = vsub.f32 1.5, %v248
        %v250 = vmul.f32 %v245, %v249
        %v251 = vmul.f32 %v244, %v250
        %vm252 = vcmp.eq.f32.partialorder %v244, inf
        %v253 = vsel %vm252, %v244, %v251
        %vm254 = vcmp.eq.f32.partialorder %v244, 0.0
        %v255 = vand.u32 %v244, 2147483648
        %v256 = vsel %vm254, %v255, %v253
        %v257 = vadd.f32 %v234, 0.1
        %v258 = vstv %s193
        %v259 = vadd.f32 %v234, %v258
        %v260 = vsub.f32 0.0, %v256
        %vm261 = vcmp.ge.f32.partialorder %v256, %v257
        %vm262 = vcmp.le.f32.partialorder %v256, %v259
        %vm263 = vmand %vm261, %vm262
        %vm264 = vcmp.ge.f32.partialorder %v260, %v257
        %vm265 = vcmp.le.f32.partialorder %v260, %v259
        %vm266 = vmand %vm264, %vm265
        %vm267 = vcmp.gt.f32.partialorder %v243, 0.0
        %vm268 = vmor %vm266, %vm263
        %vm269 = vmand %vm267, %vm268
        %vm270 = vmxor %vm269, 1
        %271 = vst [vmem:[%s175] sm:$0xff] %v220
        %s272 = scalar_lea.vmem %s175, 8 [#allocation7]
        %273 = vst [vmem:[%s272] sm:$0xff] %v221
        %s274 = scalar_lea.vmem %s175, 16 [#allocation7]
        %275 = vst [vmem:[%s274] sm:$0xff] %v222
        %v276 = vsel %vm270, %v223, 0.0
        %v277 = vstv %s186
        %v278 = vmul.f32 %v277, %v276
        %279 = vst [vmem:[%s182] sm:$0xff] %v278
        %v280 = vstv %s187
        %v281 = vmul.f32 %v280, %v276
        %s282 = scalar_lea.vmem %s182, 8 [#allocation8]
        %283 = vst [vmem:[%s282] sm:$0xff] %v281
        %v284 = vstv %s188
        %v285 = vmul.f32 %v284, %v276
        %s286 = scalar_lea.vmem %s182, 16 [#allocation8]
        %287 = vst [vmem:[%s286] sm:$0xff] %v285
        %s288 = sand.u32 %s66, 1
        %s289 = scalar_lea.sflag [#allocation6], %s288
        %s290 = sand.u32 %s66, 1
        %s291 = smul.addr %s290, 24
        %s292 = scalar_lea.vmem [#allocation7], %s291
        %s293 = sand.u32 %s92, 1
        %s294 = scalar_lea.sflag [#allocation9], %s293
        %s295 = sand.u32 %s92, 1
        %s296 = smul.addr %s295, 24
        %s297 = scalar_lea.vmem [#allocation8], %s296
        // Predicated region
        $region29: #{tpu_custom_call.1} parent=23 // pred_check
          %p298 = pneg %p76
        $region30: #{tpu_custom_call.1} parent=23 // pred_check_branch
          %300 = sbr.rel (%p298) target = $region32
        $region31: #{tpu_custom_call.1} parent=23 // pred_region
          %302 = vsyncadd %s289, 0
          %s303 = smul.addr %s32, 8
          %s304 = scalar_lea.hbm %s2, %s303
          %s305 = sshll.u32 %s292, 4
          %s306 = int_to_ptr.vmem [resolvable:$true] %s305
          %s307 = sshll.u32 %s304, 4
          %s308 = int_to_ptr.hbm [resolvable:$true] %s307
          %313 = dma.vmem_to_hbm [thread:$0]  %s306, 384, %s308, %s289, 128, 512, 8
        $region32: #{tpu_custom_call.1} parent=23 // pred_fallthru
          _
        // Predicated region
        $region33: #{tpu_custom_call.1} parent=23 // pred_check
          %p314 = pneg %p102
        $region34: #{tpu_custom_call.1} parent=23 // pred_check_branch
          %316 = sbr.rel (%p314) target = $region36
        $region35: #{tpu_custom_call.1} parent=23 // pred_region
          %318 = vsyncadd %s294, 0
          %s319 = smul.addr %s32, 8
          %s320 = scalar_lea.hbm %s3, %s319
          %s321 = sshll.u32 %s297, 4
          %s322 = int_to_ptr.vmem [resolvable:$true] %s321
          %s323 = sshll.u32 %s320, 4
          %s324 = int_to_ptr.hbm [resolvable:$true] %s323
          %329 = dma.vmem_to_hbm [thread:$0]  %s322, 384, %s324, %s294, 128, 512, 8
        $region36: #{tpu_custom_call.1} parent=23 // pred_fallthru
          _
      $region24: #{tpu_custom_call.1} parent=5 // pred_fallthru
        _
      %p330 = scmp.le.s32.totalorder 2, %s27
      // Predicated region
      $region37: #{tpu_custom_call.1} parent=5 // pred_check
        %p331 = pneg %p330
      $region38: #{tpu_custom_call.1} parent=5 // pred_check_branch
        %333 = sbr.rel (%p331) target = $region40
      $region39: #{tpu_custom_call.1} parent=5 // pred_region
        %s334 = ssub.s32 %s27, 2
        // Predicated region
        $region41: #{tpu_custom_call.1} parent=39 // pred_check
          %p335 = pneg %p82
        $region42: #{tpu_custom_call.1} parent=39 // pred_check_branch
          %337 = sbr.rel (%p335) target = $region44
        $region43: #{tpu_custom_call.1} parent=39 // pred_region
          %s338 = sand.u32 %s67, 1
          %s339 = scalar_lea.sflag [#allocation6], %s338
          %s340 = sand.u32 %s67, 1
          %s341 = smul.addr %s340, 24
          %s342 = scalar_lea.vmem [#allocation7], %s341
          %344 = dma.done %s339, 384
        $region44: #{tpu_custom_call.1} parent=39 // pred_fallthru
          _
        // Predicated region
        $region45: #{tpu_custom_call.1} parent=39 // pred_check
          %p345 = pneg %p108
        $region46: #{tpu_custom_call.1} parent=39 // pred_check_branch
          %347 = sbr.rel (%p345) target = $region48
        $region47: #{tpu_custom_call.1} parent=39 // pred_region
          %s348 = sand.u32 %s93, 1
          %s349 = scalar_lea.sflag [#allocation9], %s348
          %s350 = sand.u32 %s93, 1
          %s351 = smul.addr %s350, 24
          %s352 = scalar_lea.vmem [#allocation8], %s351
          %354 = dma.done %s349, 384
        $region48: #{tpu_custom_call.1} parent=39 // pred_fallthru
          _
      $region40: #{tpu_custom_call.1} parent=5 // pred_fallthru
        _
    $region6: #{tpu_custom_call.1} parent=1 // loop_footer
      %s31 = sadd.s32 1, %s27
    $region7: #{tpu_custom_call.1} parent=1 // loop_footer_branch
      %26 = sbr.rel target = $region3
    $region8: #{tpu_custom_call.1} parent=1 // loop_exit
      _
    %355 = vsyncpa [#allocation5], 1
    %s356 = scalar_lea.sflag [#allocation5], 1
    %357 = vsyncpa %s356, 1
    %358 = vsyncpa [#allocation6], 1
    %s359 = scalar_lea.sflag [#allocation6], 1
    %360 = vsyncpa %s359, 1
    %361 = vsyncpa [#allocation9], 1
    %s362 = scalar_lea.sflag [#allocation9], 1
    %363 = vsyncpa %s362, 1

</llo_original>
